<compile_context>
chip_gen: v6e
topology: v6e:2x2x1
jax: 0.10.0
libtpu: 0.0.40
codegen_flags: <defaults>
</compile_context>

<pallas_src>
import functools

import jax
import jax.numpy as jnp
from jax.experimental import pallas as pl
from jax.experimental.pallas import tpu as pltpu

_ONEHOT_MAX_VOCAB = 1024   # one-hot MXU path only for tiny vocabularies
_ROW_WAVE = 16             # rows DMA'd per wave on the gather path


def _round_up(x, m):
    return (x + m - 1) // m * m


def _vmem_cap_bytes():
    """Generation-aware VMEM budget: ~85% of physical per-core VMEM."""
    cap = 64 << 20  # conservative fallback (v7x per-TC physical VMEM)
    try:
        cap = int(getattr(pltpu.get_tpu_info(), "vmem_capacity_bytes", cap))
    except Exception:
        pass
    return max(int(cap * 0.85), 16 << 20)


# ----------------------------------------------------------------------------
# Path 1: tiny vocabulary -> one-hot matmul on the MXU (table VMEM-resident)
# ----------------------------------------------------------------------------
def _onehot_kernel(ids_ref, table_ref, out_ref, iota_ref):
    # ids_ref:   (TT, 1)        int32   -- block of token ids
    # table_ref: (V_pad, E_pad) f32/bf16 -- full padded table (VMEM resident)
    # out_ref:   (TT, E_pad)    table dtype
    # iota_ref:  (TT, V_pad)    int32 scratch -- column indices, filled once
    @pl.when(pl.program_id(0) == 0)
    def _():
        # Precompute the column iota once and reuse it every grid step:
        # cuts ~1/3 of the per-tile VALU work of building the one-hot.
        iota_ref[...] = jax.lax.broadcasted_iota(jnp.int32, iota_ref.shape, 1)

    # Build the one-hot directly in the MXU input dtype (no f32 intermediate).
    onehot = (iota_ref[...] == ids_ref[...]).astype(table_ref.dtype)
    out = jnp.dot(onehot, table_ref[...], preferred_element_type=jnp.float32)
    out_ref[...] = out.astype(out_ref.dtype)


def _lookup_onehot(ids, table, padding_idx, token_tile):
    t = ids.shape[0]
    v, e = table.shape
    dt = table.dtype
    itemsize = jnp.dtype(dt).itemsize

    # Pad BOTH dims of the (tiny) table to multiples of 128: lane-dense output
    # stores and an un-ragged MXU contraction (padded rows hit zero one-hot
    # columns, so results are unchanged).
    v_pad = _round_up(max(v, 128), 128)
    e_pad = _round_up(max(e, 128), 128)
    table_p = table
    if (v_pad, e_pad) != (v, e):
        table_p = jnp.pad(table, ((0, v_pad - v), (0, e_pad - e)))

    if token_tile is not None:
        tt = _round_up(max(int(token_tile), 8), 8)
    else:
        tt = 512 if e_pad <= 256 else 256
        tt = min(tt, _round_up(t, 8))          # tiny inputs: one grid step
        tt = _round_up(tt, 8)
    t_pad = _round_up(t, tt)
    if t_pad != t:
        ids = jnp.pad(ids, (0, t_pad - t), constant_values=padding_idx)
    ids2d = ids.reshape(t_pad, 1)

    table_bytes = v_pad * e_pad * itemsize
    out_tile_bytes = tt * e_pad * itemsize
    iota_bytes = tt * v_pad * 4
    # TODO(synk): single-buffer the resident table (pipeline_mode=pl.Buffered(1))
    # to halve table VMEM; double-buffering is acceptable only because this
    # path is restricted to tiny vocabularies.
    vmem_limit = (2 * table_bytes + 2 * out_tile_bytes + 2 * tt * 4
                  + iota_bytes + (4 << 20))
    vmem_limit = int(min(max(vmem_limit, 16 << 20), _vmem_cap_bytes()))

    cost = pl.CostEstimate(
        flops=2 * t_pad * v_pad * e_pad,
        transcendentals=0,
        bytes_accessed=table_bytes + t_pad * 4 + t_pad * e_pad * itemsize,
    )

    out_p = pl.pallas_call(
        _onehot_kernel,
        out_shape=jax.ShapeDtypeStruct((t_pad, e_pad), dt),
        grid_spec=pltpu.PrefetchScalarGridSpec(
            num_scalar_prefetch=0,
            grid=(t_pad // tt,),
            in_specs=[
                pl.BlockSpec((tt, 1), lambda i: (i, 0)),        # ids tile
                pl.BlockSpec((v_pad, e_pad), lambda i: (0, 0)),  # full table
            ],
            out_specs=pl.BlockSpec((tt, e_pad), lambda i: (i, 0)),
            scratch_shapes=[pltpu.VMEM((tt, v_pad), jnp.int32)],
        ),
        compiler_params=pltpu.CompilerParams(
            # "arbitrary": the iota scratch is initialized at program_id==0 and
            # reused; a "parallel" (megacore-sharded) axis could leave one
            # core's scratch uninitialized.
            dimension_semantics=("arbitrary",),
            vmem_limit_bytes=vmem_limit,
        ),
        cost_estimate=cost,
    )(ids2d, table_p)

    out_p = out_p[:t] if t_pad != t else out_p
    return out_p[:, :e] if e_pad != e else out_p


# ----------------------------------------------------------------------------
# Path 2: realistic vocabulary -> DMA row gather (table stays in HBM)
# ----------------------------------------------------------------------------
def _gather_kernel(ids_ref, table_ref, out_ref, rows_vmem, sem):
    # ids_ref:   SMEM (T_pad,) int32        -- all token ids (scalar prefetch)
    # table_ref: HBM  (V, E)                -- raw ref, never auto-DMA'd
    # out_ref:   VMEM (TT, E)               -- output block for this grid step
    # rows_vmem: VMEM (2, _ROW_WAVE, E)     -- double-buffered DMA landing pad
    # sem:       DMA semaphores (2, _ROW_WAVE)
    tile = pl.program_id(0)
    tt = out_ref.shape[0]
    base = tile * tt
    n_waves = tt // _ROW_WAVE

    def issue(wave, slot):
        off = wave * _ROW_WAVE
        for r in range(_ROW_WAVE):            # static unroll: RW copies in flight
            row = ids_ref[base + off + r]
            pltpu.make_async_copy(
                table_ref.at[row], rows_vmem.at[slot, r], sem.at[slot, r]
            ).start()

    def wait(slot):
        for r in range(_ROW_WAVE):
            pltpu.make_async_copy(
                table_ref.at[0], rows_vmem.at[slot, r], sem.at[slot, r]
            ).wait()

    issue(0, 0)                               # prime slot 0

    @pl.loop(0, n_waves)
    def _(w):
        slot = w & 1

        @pl.when(w + 1 < n_waves)
        def _():
            issue(w + 1, 1 - slot)            # prefetch next wave

        wait(slot)                            # current wave has landed
        off = pl.multiple_of(w * _ROW_WAVE, _ROW_WAVE)
        out_ref[pl.ds(off, _ROW_WAVE), :] = rows_vmem[slot]


def _lookup_gather(ids, table, padding_idx, token_tile):
    t = ids.shape[0]
    v, e = table.shape
    dt = table.dtype
    itemsize = jnp.dtype(dt).itemsize

    if token_tile is not None:
        tt = _round_up(max(int(token_tile), _ROW_WAVE), _ROW_WAVE)
    else:
        # Aim for ~1 MiB output blocks (amortizes the ~0.35us/grid-step
        # overhead and keeps the VMEM<->HBM writeback near roofline).
        tt = max(_ROW_WAVE, min(2048, (1 << 20) // max(e * itemsize, 1)))
        tt = _round_up(tt, _ROW_WAVE)
        tt = min(tt, _round_up(t, _ROW_WAVE))  # tiny inputs: one grid step
    t_pad = _round_up(t, tt)
    if t_pad != t:
        # Pad with padding_idx (a valid row); padded rows are sliced away.
        ids = jnp.pad(ids, (0, t_pad - t), constant_values=padding_idx)

    out_tile_bytes = tt * e * itemsize
    pad_bytes = 2 * _ROW_WAVE * e * itemsize
    vmem_limit = 2 * out_tile_bytes + pad_bytes + (8 << 20)
    vmem_limit = int(min(max(vmem_limit, 16 << 20), _vmem_cap_bytes()))

    # Bytes-dominated cost: ids read + table rows gathered + output written.
    cost = pl.CostEstimate(
        flops=0,
        transcendentals=0,
        bytes_accessed=t_pad * 4 + 2 * t_pad * e * itemsize,
    )

    out_p = pl.pallas_call(
        _gather_kernel,
        out_shape=jax.ShapeDtypeStruct((t_pad, e), dt),
        grid_spec=pltpu.PrefetchScalarGridSpec(
            num_scalar_prefetch=1,                       # ids -> SMEM
            grid=(t_pad // tt,),
            in_specs=[pl.BlockSpec(memory_space=pl.ANY)],  # table stays in HBM
            out_specs=pl.BlockSpec((tt, e), lambda i, ids_sref: (i, 0)),
            scratch_shapes=[
                pltpu.VMEM((2, _ROW_WAVE, e), dt),
                pltpu.SemaphoreType.DMA((2, _ROW_WAVE)),
            ],
        ),
        compiler_params=pltpu.CompilerParams(
            dimension_semantics=("parallel",),  # independent token tiles
            vmem_limit_bytes=vmem_limit,
        ),
        cost_estimate=cost,
    )(ids, table)

    return out_p[:t] if t_pad != t else out_p


# ----------------------------------------------------------------------------
# Public lookup + module wrapper
# ----------------------------------------------------------------------------
@functools.partial(jax.jit, static_argnames=("padding_idx", "token_tile"))
def embedding_lookup(ids_flat, table, *, padding_idx=0, token_tile=None):
    """ids_flat: (T,) int; table: (V, E) -> (T, E) in table.dtype."""
    v, _ = table.shape
    # Clamp for DMA safety; PyTorch would raise on out-of-range ids instead.
    ids = jnp.clip(ids_flat.reshape(-1).astype(jnp.int32), 0, v - 1)
    if v <= _ONEHOT_MAX_VOCAB:
        return _lookup_onehot(ids, table, padding_idx, token_tile)
    return _lookup_gather(ids, table, padding_idx, token_tile)


class EmbeddingLayerPallas:
    """JAX/Pallas equivalent of the PyTorch EmbeddingLayer module."""

    def __init__(self, vocab_size, emb_dim, is_sparse=True, padding_idx=0,
                 key=jax.random.PRNGKey(0), param_dtype=jnp.float32):
        # nn.Embedding default init: weight ~ N(0, 1), row padding_idx zeroed.
        # `is_sparse` only affects gradient representation in PyTorch; no-op.
        w = jax.random.normal(key, (vocab_size, emb_dim)).astype(param_dtype)
        if padding_idx is not None:
            w = w.at[padding_idx].set(0)
        self.weight = w
        self.padding_idx = int(padding_idx) if padding_idx is not None else 0

    def __call__(self, inputs):
        orig_shape = inputs.shape
        out_flat = embedding_lookup(inputs.reshape(-1), self.weight,
                                    padding_idx=self.padding_idx)
        return out_flat.reshape(*orig_shape, self.weight.shape[1])


if __name__ == "__main__":
    key = jax.random.PRNGKey(0)
    k_ids, k_w, k_ids2, k_w2, k_ms1, k_ms2 = jax.random.split(key, 6)

    # ------- tiny vocab: one-hot MXU path -----------------------------------
    vocab_size, emb_dim = 64, 32
    batch, seq = 2, 8
    layer = EmbeddingLayerPallas(vocab_size, emb_dim, is_sparse=True,
                                 padding_idx=0, key=k_w)
    ids = jax.random.randint(k_ids, (batch, seq), minval=0,
                             maxval=vocab_size, dtype=jnp.int32)
    ids = ids.at[0, 0].set(0)                 # exercise padding_idx
    out = jax.block_until_ready(layer(ids))
    ref = jnp.take(layer.weight, ids, axis=0)
    assert out.shape == (batch, seq, emb_dim)
    assert jnp.allclose(out, ref, atol=1e-5, rtol=1e-5), "onehot path mismatch"
    assert jnp.allclose(out[0, 0], 0.0), "padding_idx row must be zero"

    # T not a multiple of the token tile (odd shape)
    ids_odd = jax.random.randint(k_ids, (3, 5), minval=0,
                                 maxval=vocab_size, dtype=jnp.int32)
    out_odd = jax.block_until_ready(layer(ids_odd))
    ref_odd = jnp.take(layer.weight, ids_odd, axis=0)
    assert out_odd.shape == (3, 5, emb_dim)
    assert jnp.allclose(out_odd, ref_odd, atol=1e-5, rtol=1e-5)

    # multi-grid-step onehot path (exercises the persistent iota scratch)
    ids_ms1 = jax.random.randint(k_ms1, (20,), minval=0,
                                 maxval=vocab_size, dtype=jnp.int32)
    out_ms1 = jax.block_until_ready(
        embedding_lookup(ids_ms1, layer.weight, padding_idx=0, token_tile=8))
    assert jnp.allclose(out_ms1, jnp.take(layer.weight, ids_ms1, axis=0),
                        atol=1e-5, rtol=1e-5)

    # ------- larger vocab: DMA row-gather path -------------------------------
    vocab2, emb2 = 4096, 128
    layer2 = EmbeddingLayerPallas(vocab2, emb2, is_sparse=True,
                                  padding_idx=0, key=k_w2)
    ids2 = jax.random.randint(k_ids2, (3, 7), minval=0,
                              maxval=vocab2, dtype=jnp.int32)
    ids2 = ids2.at[0, 0].set(0)
    out2 = jax.block_until_ready(layer2(ids2))
    ref2 = jnp.take(layer2.weight, ids2, axis=0)
    assert out2.shape == (3, 7, emb2)
    assert jnp.allclose(out2, ref2, atol=1e-5, rtol=1e-5), "gather path mismatch"
    assert jnp.allclose(out2[0, 0], 0.0), "padding_idx row must be zero"

    # multi-grid-step gather path (exercises per-tile SMEM offsets + pipelining)
    ids_ms2 = jax.random.randint(k_ms2, (40,), minval=0,
                                 maxval=vocab2, dtype=jnp.int32)
    out_ms2 = jax.block_until_ready(
        embedding_lookup(ids_ms2, layer2.weight, padding_idx=0, token_tile=16))
    assert jnp.allclose(out_ms2, jnp.take(layer2.weight, ids_ms2, axis=0),
                        atol=1e-5, rtol=1e-5)

    print("KERNEL_OK")
</pallas_src>

<mosaic_0001>
module attributes {stable_mosaic.version = 11 : i64} {
  func.func @_onehot_kernel(%arg0: i32, %arg1: memref<16x1xi32, #tpu.memory_space<vmem>>, %arg2: memref<128x128xf32, #tpu.memory_space<vmem>>, %arg3: memref<16x128xf32, #tpu.memory_space<vmem>>, %arg4: memref<16x128xi32, #tpu.memory_space<vmem>>) attributes {dimension_semantics = [#tpu.dimension_semantics<arbitrary>], iteration_bounds = array<i64: 1>, scalar_prefetch = 0 : i64, scratch_operands = 1 : i64, tpu.core_type = #tpu.core_type<tc>, window_params = [{transform_indices = @transform_0, window_bounds = array<i64: 16, 1>}, {pipeline_mode = #tpu.pipeline_mode<synchronous>, transform_indices = @transform_1, window_bounds = array<i64: 128, 128>}, {transform_indices = @transform_2, window_bounds = array<i64: 16, 128>}]} {
    %c0_i32 = arith.constant 0 : i32
    %0 = arith.cmpi eq, %arg0, %c0_i32 : i32
    %1 = arith.extui %0 : i1 to i32
    %c0_i32_0 = arith.constant 0 : i32
    %2 = arith.cmpi ne, %1, %c0_i32_0 : i32
    scf.if %2 {
      %12 = tpu.iota {dimensions = array<i32: 1>} : vector<16x128xi32>
      %c0_8 = arith.constant 0 : index
      %c0_9 = arith.constant 0 : index
      %13 = vector.load %arg4[%c0_8, %c0_9] : memref<16x128xi32, #tpu.memory_space<vmem>>, vector<16x128xi32>
      tpu.vector_store %arg4[%c0_8, %c0_9], %12 {strides = array<i32>} : memref<16x128xi32, #tpu.memory_space<vmem>>, vector<16x128xi32>,
    } else {
    }
    %c0 = arith.constant 0 : index
    %c0_1 = arith.constant 0 : index
    %3 = vector.load %arg4[%c0, %c0_1] : memref<16x128xi32, #tpu.memory_space<vmem>>, vector<16x128xi32>
    %c0_2 = arith.constant 0 : index
    %c0_3 = arith.constant 0 : index
    %4 = vector.load %arg1[%c0_2, %c0_3] : memref<16x1xi32, #tpu.memory_space<vmem>>, vector<16x1xi32>
    %5 = vector.broadcast %4 : vector<16x1xi32> to vector<16x128xi32>
    %6 = arith.cmpi eq, %3, %5 : vector<16x128xi32>
    %7 = arith.extui %6 : vector<16x128xi1> to vector<16x128xi32>
    %8 = arith.sitofp %7 : vector<16x128xi32> to vector<16x128xf32>
    %c0_4 = arith.constant 0 : index
    %c0_5 = arith.constant 0 : index
    %9 = vector.load %arg2[%c0_4, %c0_5] : memref<128x128xf32, #tpu.memory_space<vmem>>, vector<128x128xf32>
    %cst = arith.constant dense<0.000000e+00> : vector<16x128xf32>
    %10 = tpu.matmul %8, %9, %cst {dimension_numbers = #tpu.dot_dimension_numbers<[1], [0], [0], [1], [0, 0, 1, 1], [], []>} : vector<16x128xf32>, vector<128x128xf32>, vector<16x128xf32> -> vector<16x128xf32>
    %c0_6 = arith.constant 0 : index
    %c0_7 = arith.constant 0 : index
    %11 = vector.load %arg3[%c0_6, %c0_7] : memref<16x128xf32, #tpu.memory_space<vmem>>, vector<16x128xf32>
    tpu.vector_store %arg3[%c0_6, %c0_7], %10 {strides = array<i32>} : memref<16x128xf32, #tpu.memory_space<vmem>>, vector<16x128xf32>,
    return
  }
  func.func @transform_0(%arg0: i32) -> (i32, i32) {
    %c0_i32 = arith.constant 0 : i32
    %c0_i32_0 = arith.constant 0 : i32
    return %arg0, %c0_i32 : i32, i32
  }
  func.func @transform_1(%arg0: i32) -> (i32, i32) {
    %c0_i32 = arith.constant 0 : i32
    %c0_i32_0 = arith.constant 0 : i32
    %c0_i32_1 = arith.constant 0 : i32
    return %c0_i32, %c0_i32_0 : i32, i32
  }
  func.func @transform_2(%arg0: i32) -> (i32, i32) {
    %c0_i32 = arith.constant 0 : i32
    %c0_i32_0 = arith.constant 0 : i32
    return %arg0, %c0_i32 : i32, i32
  }
}

</mosaic_0001>

<llo_original>
// kernel: embedding_lookup.1
$region0: #{embedding_lookup.1}
  #allocation0 [shape = 'u32[]', space=smem, size = 0x4, offset = 0x4, fixed_abs, tag = 'smem constant byte address 0x4 - core index']
  #allocation1 [shape = 'u32[144,128]{1,0:T(1,128)}', space=vmem, size = 0x12000, scoped, tag = 'internal scratch']
  #allocation2 [shape = 's32[16,128]{1,0:T(8,128)}', space=vmem, size = 0x2000, scoped, tag = 'scratch operand']
  %s0 = inlined_call_operand.vmem [shape: s32[16,1], index: 0, kind: input, shape index: {}]
  %s1 = inlined_call_operand.vmem [shape: f32[128,128], index: 1, kind: input, shape index: {}]
  %s2 = inlined_call_operand.hbm [shape: f32[16,128], index: 2, kind: output, shape index: {}]
  %s3 = sld [smem:[#allocation0]]
  $region22: #{embedding_lookup.1} parent=0
    _
  %s5 = ssub.s32 1, %s3
  %s6 = scalar_select 0, %s5, %s3
  $region1: #{embedding_lookup.1} parent=0
    #allocation3 [shape = 'u8[8192]{0}', space=vmem, size = 0x2000, scoped, tag = 'output window, operand 0, single buffered']
    #allocation4 [shape = 's32[1]{0}', space=sflag, size = 0x4, scoped, tag = 'scoped memory for embedding_lookup.1']
    %7 = vsyncpa [#allocation4], 0
    // Predicated region
    $region2: #{embedding_lookup.1} parent=1 // pred_check
      _
    $region3: #{embedding_lookup.1} parent=1 // pred_check_branch
      %9 = sbr.rel (0) target = $region5
    $region4: #{embedding_lookup.1} parent=1 // pred_region
      _
    $region5: #{embedding_lookup.1} parent=1 // pred_fallthru
      _
    // Predicated region
    $region6: #{embedding_lookup.1} parent=1 // pred_check
      _
    $region7: #{embedding_lookup.1} parent=1 // pred_check_branch
      %11 = sbr.rel (0) target = $region9
    $region8: #{embedding_lookup.1} parent=1 // pred_region
      _
    $region9: #{embedding_lookup.1} parent=1 // pred_fallthru
      _
    %p12 = scmp.eq.s32.totalorder 0, 0
    // Predicated region
    $region10: #{embedding_lookup.1} parent=1 // pred_check
      %p13 = pneg %p12
    $region11: #{embedding_lookup.1} parent=1 // pred_check_branch
      %15 = sbr.rel (%p13) target = $region13
    $region12: #{embedding_lookup.1} parent=1 // pred_region
      %v16 = vlaneseq
      %v17 = vand.u32 %v16, 127
      %18 = vst [vmem:[#allocation2] sm:$0xff] %v17
      %19 = vst [vmem:[#allocation2 + $0x8] sm:$0xff] %v17
    $region13: #{embedding_lookup.1} parent=1 // pred_fallthru
      _
    %v20 = vld [vmem:[#allocation2] sm:$0xff]
    %v21 = vld [vmem:[#allocation2 + $0x8] sm:$0xff]
    %v22 = vld [vmem:[%s0] sm:$0xff]
    %v23 = vld [vmem:[%s0 + $0x8] sm:$0xff]
    %24 = vset.pattern.permute.xlu0 0
    %25 = vperm.xlu0 %24, %v22
    %v26 = vpop.permute.xlu0 %25
    %27 = vset.pattern.permute.xlu0 0
    %28 = vperm.xlu0 %27, %v23
    %v29 = vpop.permute.xlu0 %28
    %vm30 = vcmp.eq.s32.totalorder %v20, %v26
    %vm31 = vcmp.eq.s32.totalorder %v21, %v29
    %v32 = vsel %vm30, 1, 0
    %v33 = vsel %vm31, 1, 0
    %v34 = vcvt.s32.f32 %v32
    %v35 = vcvt.s32.f32 %v33
    %v36 = vld [vmem:[%s1] sm:$0xff]
    %v37 = vld [vmem:[%s1 + $0x8] sm:$0xff]
    %v38 = vld [vmem:[%s1 + $0x10] sm:$0xff]
    %v39 = vld [vmem:[%s1 + $0x18] sm:$0xff]
    %v40 = vld [vmem:[%s1 + $0x20] sm:$0xff]
    %v41 = vld [vmem:[%s1 + $0x28] sm:$0xff]
    %v42 = vld [vmem:[%s1 + $0x30] sm:$0xff]
    %v43 = vld [vmem:[%s1 + $0x38] sm:$0xff]
    %v44 = vld [vmem:[%s1 + $0x40] sm:$0xff]
    %v45 = vld [vmem:[%s1 + $0x48] sm:$0xff]
    %v46 = vld [vmem:[%s1 + $0x50] sm:$0xff]
    %v47 = vld [vmem:[%s1 + $0x58] sm:$0xff]
    %v48 = vld [vmem:[%s1 + $0x60] sm:$0xff]
    %v49 = vld [vmem:[%s1 + $0x68] sm:$0xff]
    %v50 = vld [vmem:[%s1 + $0x70] sm:$0xff]
    %v51 = vld [vmem:[%s1 + $0x78] sm:$0xff]
    %52 = vmatprep.subr.mxu0 0.0
    %53 = vmatpush1.msra.mxu0 %v51
    %54 = vmatprep.subr.mxu0 0.0
    %55 = vmatpush1.msra.mxu0 %v50
    %56 = vmatprep.subr.mxu0 0.0
    %57 = vmatpush1.msra.mxu0 %v49
    %58 = vmatprep.subr.mxu0 0.0
    %59 = vmatpush1.msra.mxu0 %v48
    %60 = vmatprep.subr.mxu0 0.0
    %61 = vmatpush1.msra.mxu0 %v47
    %62 = vmatprep.subr.mxu0 0.0
    %63 = vmatpush1.msra.mxu0 %v46
    %64 = vmatprep.subr.mxu0 0.0
    %65 = vmatpush1.msra.mxu0 %v45
    %66 = vmatprep.subr.mxu0 0.0
    %67 = vmatpush1.msra.mxu0 %v44
    %68 = vmatprep.subr.mxu0 0.0
    %69 = vmatpush1.msra.mxu0 %v43
    %70 = vmatprep.subr.mxu0 0.0
    %71 = vmatpush1.msra.mxu0 %v42
    %72 = vmatprep.subr.mxu0 0.0
    %73 = vmatpush1.msra.mxu0 %v41
    %74 = vmatprep.subr.mxu0 0.0
    %75 = vmatpush1.msra.mxu0 %v40
    %76 = vmatprep.subr.mxu0 0.0
    %77 = vmatpush1.msra.mxu0 %v39
    %78 = vmatprep.subr.mxu0 0.0
    %79 = vmatpush1.msra.mxu0 %v38
    %80 = vmatprep.subr.mxu0 0.0
    %81 = vmatpush1.msra.mxu0 %v37
    %82 = vmatprep.subr.mxu0 0.0
    %83 = vmatpush1.msra.mxu0 %v36
    %84 = vmatprep.subr.mxu0 0.0
    %85 = vmatpush2.msra.mxu0 0.0
    %86 = vmatprep.subr.mxu0 0.0
    %87 = vmatpush2.msra.mxu0 0.0
    %88 = vmatprep.subr.mxu0 0.0
    %89 = vmatpush2.msra.mxu0 0.0
    %90 = vmatprep.subr.mxu0 0.0
    %91 = vmatpush2.msra.mxu0 0.0
    %92 = vmatprep.subr.mxu0 0.0
    %93 = vmatpush2.msra.mxu0 0.0
    %94 = vmatprep.subr.mxu0 0.0
    %95 = vmatpush2.msra.mxu0 0.0
    %96 = vmatprep.subr.mxu0 0.0
    %97 = vmatpush2.msra.mxu0 0.0
    %98 = vmatprep.subr.mxu0 0.0
    %99 = vmatpush2.msra.mxu0 0.0
    %100 = vmatprep.subr.mxu0 0.0
    %101 = vmatpush2.msra.mxu0 0.0
    %102 = vmatprep.subr.mxu0 0.0
    %103 = vmatpush2.msra.mxu0 0.0
    %104 = vmatprep.subr.mxu0 0.0
    %105 = vmatpush2.msra.mxu0 0.0
    %106 = vmatprep.subr.mxu0 0.0
    %107 = vmatpush2.msra.mxu0 0.0
    %108 = vmatprep.subr.mxu0 0.0
    %109 = vmatpush2.msra.mxu0 0.0
    %110 = vmatprep.subr.mxu0 0.0
    %111 = vmatpush2.msra.mxu0 0.0
    %112 = vmatprep.subr.mxu0 0.0
    %113 = vmatpush2.msra.mxu0 0.0
    %114 = vmatprep.subr.mxu0 0.0
    %115 = vmatpush2.msra.mxu0 0.0
    %116 = vmatprep.mubr.f32.mxu0 0.0
    %117 = vmatmul.mubr.f32.gmra.mxu0 %v34
    %v118 = vpop.f32.mrf.mxu0
    %v119 = vadd.f32 0.0, %v118
    %v120 = vpop.f32.mrf.mxu0
    %121 = vmatprep.mubr.f32.mxu0 0.0
    %122 = vmatmul.mubr.f32.gmra.mxu0 %v35
    %v123 = vpop.f32.mrf.mxu0
    %v124 = vadd.f32 0.0, %v123
    %v125 = vpop.f32.mrf.mxu0
    %126 = vdwg.mxu0
    %127 = vst [vmem:[#allocation3] sm:$0xff] %v119
    %128 = vst [vmem:[#allocation3 + $0x8] sm:$0xff] %v124
    // Predicated region
    $region14: #{embedding_lookup.1} parent=1 // pred_check
      _
    $region15: #{embedding_lookup.1} parent=1 // pred_check_branch
      %130 = sbr.rel (0) target = $region17
    $region16: #{embedding_lookup.1} parent=1 // pred_region
      %s132 = ssub.s32 256, 256
      %133 = vsyncadd [#allocation4], %s132
      %s134 = sshll.u32 [#allocation3], 4
      %s135 = int_to_ptr.vmem [resolvable:$true] %s134
      %140 = dma.vmem_to_hbm [thread:$0]  %s135, 256, %s2, [#allocation4], 128, 128, 8
    $region17: #{embedding_lookup.1} parent=1 // pred_fallthru
      _
    // Predicated region
    $region18: #{embedding_lookup.1} parent=1 // pred_check
      _
    $region19: #{embedding_lookup.1} parent=1 // pred_check_branch
      %142 = sbr.rel (0) target = $region21
    $region20: #{embedding_lookup.1} parent=1 // pred_region
      %143 = dma.done [#allocation4], 256
    $region21: #{embedding_lookup.1} parent=1 // pred_fallthru
      _
    %144 = vsyncpa [#allocation4], 1

</llo_original>
